<compile_context>
chip_gen: v6e
topology: v6e:2x2x1
jax: 0.10.0
libtpu: 0.0.40
codegen_flags: <defaults>
</compile_context>

<pallas_src>
import jax
import jax.numpy as jnp
from jax import lax
from jax.experimental import pallas as pl
from jax.experimental.pallas import tpu as pltpu


def _round_up(x, m):
    return ((x + m - 1) // m) * m


def _sublane_pack(dtype):
    # Rows per vreg sublane pack: f32 -> 8, bf16 -> 16, int8/fp8 -> 32.
    return {4: 8, 2: 16, 1: 32}.get(jnp.dtype(dtype).itemsize, 8)


def _vmem_capacity_bytes():
    try:
        return int(pltpu.get_tpu_info().vmem_capacity_bytes)
    except Exception:
        return 64 << 20  # conservative fallback (v7x per-TensorCore VMEM)


def _largest_aligned_divisor(n, align, cap):
    """Largest multiple of `align` that divides `n` and is <= cap (>= align).

    Assumes n % align == 0.
    """
    best = align
    d = align
    limit = min(n, max(cap, align))
    while d <= limit:
        if n % d == 0:
            best = d
        d += align
    return best


def _dense_kernel(x_ref, w_ref, b_ref, o_ref, acc_ref):
    """One (tm, tn) output tile, accumulated over the K grid axis.

    x_ref  : [tm, tk]  activation tile
    w_ref  : [tn, tk]  weight tile, PyTorch [d_out, d_in] layout (no transpose)
    b_ref  : [1,  tn]  bias tile
    o_ref  : [tm, tn]  output tile
    acc_ref: [tm, tn]  f32 VMEM accumulator scratch
    """
    k = pl.program_id(2)

    @pl.when(k == 0)
    def _():
        acc_ref[...] = jnp.zeros_like(acc_ref)

    # x @ W.T: contract the trailing (d_in) axis of both operands.  The MXU
    # handles this transposed-B ("NT") form natively, so no XLU transpose is
    # emitted per K step and the weight never needs a layout change.
    acc_ref[...] += lax.dot_general(
        x_ref[...], w_ref[...],
        dimension_numbers=(((1,), (1,)), ((), ())),
        preferred_element_type=jnp.float32,
    )

    @pl.when(k == pl.num_programs(2) - 1)
    def _():
        o_ref[...] = (acc_ref[...] + b_ref[...].astype(jnp.float32)).astype(o_ref.dtype)


def dense_forward(x, weight, bias, *, tm_cap=512, tn_cap=None, tk_cap=None):
    """y = x @ weight.T + bias (same semantics as torch.nn.Linear).

    x:      [..., d_in]
    weight: [d_out, d_in]   (PyTorch layout; stays untransposed)
    bias:   [d_out]
    The *_cap kwargs exist mainly so tests can force multi-tile grids at
    small shapes; defaults are generation-aware.
    """
    *lead, d_in = x.shape
    d_out = weight.shape[0]
    x2d = x.reshape((-1, d_in))
    B = x2d.shape[0]
    dtype = x.dtype
    itemsize = jnp.dtype(dtype).itemsize

    vmem_cap = _vmem_capacity_bytes()
    big_vmem = vmem_cap >= (100 << 20)           # v5e/v6e: 128 MiB; v7x: 64 MiB
    if tn_cap is None:
        tn_cap = 1024 if big_vmem else 512
    if tk_cap is None:
        tk_cap = 4096 if big_vmem else 2048

    # ---- M (batch) axis: pad only to the dtype sublane pack; tile within. ----
    pack = _sublane_pack(dtype)
    Mp = _round_up(max(B, 1), pack)
    tm = min(tm_cap, Mp)
    Mp = _round_up(Mp, tm)
    grid_m = Mp // tm

    # ---- K (contraction) axis: must be exactly covered.  Zero-pad only when
    # tiling past d_in (Pallas does not zero-fill boundary blocks). ----
    if d_in % 128 == 0:
        Kp = d_in
        tk = _largest_aligned_divisor(Kp, 128, tk_cap)
    elif d_in <= tk_cap:
        Kp = d_in            # single full-extent K block: no padding pass
        tk = d_in
    else:
        Kp = _round_up(d_in, 128)
        tk = _largest_aligned_divisor(Kp, 128, tk_cap)

    # ---- N (d_out) axis: layout-only, so avoid padding the weight whenever
    # possible.  Keep >= 2 blocks on a parallel axis when grid_m == 1 so both
    # v7x TensorCores get work. ----
    n_cap = tn_cap
    if grid_m == 1 and d_out >= 256:
        n_cap = max(128, min(tn_cap, _round_up(d_out, 128) // 2))
    if d_out % 128 == 0:
        Np = d_out
        tn = _largest_aligned_divisor(Np, 128, n_cap)
    elif d_out <= 1024:
        Np = d_out           # full-extent N block: masked edge lanes only
        tn = d_out
    else:
        Np = _round_up(d_out, 128)
        tn = _largest_aligned_divisor(Np, 128, n_cap)

    grid_n = Np // tn
    grid_k = Kp // tk

    # ---- Padding (weight pad only in the rare large, unaligned case). ----
    if (Mp, Kp) != (B, d_in):
        x2d = jnp.pad(x2d, ((0, Mp - B), (0, Kp - d_in)))
    w_p = weight
    if (Np, Kp) != (d_out, d_in):
        w_p = jnp.pad(weight, ((0, Np - d_out), (0, Kp - d_in)))
    b_p = bias.reshape((1, d_out))
    if Np != d_out:
        b_p = jnp.pad(b_p, ((0, 0), (0, Np - d_out)))

    # Double-buffered tiles + f32 accumulator + headroom, clamped to ~75% of
    # this generation's physical VMEM (≈48 MiB v7x, ≈96 MiB v5e/v6e).
    tile_bytes = 2 * (tm * tk + tn * tk + tn + tm * tn) * itemsize + tm * tn * 4
    vmem_limit = int(min(max(tile_bytes + (8 << 20), 32 << 20),
                         int(vmem_cap * 0.75)))

    # Honest byte count: weight re-streamed grid_m times, activations grid_n times.
    cost = pl.CostEstimate(
        flops=2 * Mp * Kp * Np,
        transcendentals=0,
        bytes_accessed=int((grid_n * Mp * Kp + grid_m * Np * Kp + Np + Mp * Np)
                           * itemsize),
    )

    out = pl.pallas_call(
        _dense_kernel,
        out_shape=jax.ShapeDtypeStruct((Mp, Np), dtype),
        grid_spec=pltpu.PrefetchScalarGridSpec(
            num_scalar_prefetch=0,
            grid=(grid_m, grid_n, grid_k),
            in_specs=[
                pl.BlockSpec((tm, tk), lambda i, j, k: (i, k)),   # activations
                pl.BlockSpec((tn, tk), lambda i, j, k: (j, k)),   # weight [d_out, d_in]
                pl.BlockSpec((1, tn), lambda i, j, k: (0, j)),    # bias
            ],
            out_specs=pl.BlockSpec((tm, tn), lambda i, j, k: (i, j)),
            scratch_shapes=[pltpu.VMEM((tm, tn), jnp.float32)],
        ),
        compiler_params=pltpu.CompilerParams(
            dimension_semantics=("parallel", "parallel", "arbitrary"),
            vmem_limit_bytes=vmem_limit,
        ),
        cost_estimate=cost,
    )(x2d, w_p, b_p)

    if (Mp, Np) != (B, d_out):
        out = out[:B, :d_out]
    return out.reshape((*lead, d_out))


if __name__ == "__main__":
    key = jax.random.PRNGKey(0)
    keys = jax.random.split(key, 9)

    # ---- Check 1: small shapes consistent with the module (single tile,
    # full-extent unaligned dims, no padding at all). ----
    batch, input_dim, output_dim = 8, 32, 64
    bound = 1.0 / (input_dim ** 0.5)
    w1 = jax.random.uniform(keys[0], (output_dim, input_dim),
                            minval=-bound, maxval=bound, dtype=jnp.float32)
    b1 = jax.random.uniform(keys[1], (output_dim,),
                            minval=-bound, maxval=bound, dtype=jnp.float32)
    x1 = jax.random.normal(keys[2], (batch, input_dim), dtype=jnp.float32)

    y1 = dense_forward(x1, w1, b1)
    jax.block_until_ready(y1)
    y1_ref = x1 @ w1.T + b1
    assert y1.shape == (batch, output_dim)
    assert jnp.allclose(y1, y1_ref, atol=1e-5, rtol=1e-5)

    # ---- Check 2: ragged, non-128-aligned feature dims + leading dims.
    # Exercises the full-extent (pad-free) K and N paths. ----
    B2, D_in2, D_out2 = 24, 700, 200
    bound2 = 1.0 / (D_in2 ** 0.5)
    w2 = jax.random.uniform(keys[3], (D_out2, D_in2),
                            minval=-bound2, maxval=bound2, dtype=jnp.float32)
    b2 = jax.random.uniform(keys[4], (D_out2,),
                            minval=-bound2, maxval=bound2, dtype=jnp.float32)
    x2 = jax.random.normal(keys[5], (2, B2, D_in2), dtype=jnp.float32)

    y2 = dense_forward(x2, w2, b2)
    jax.block_until_ready(y2)
    y2_ref = jnp.einsum('bsd,od->bso', x2, w2,
                        precision=lax.Precision.HIGHEST) + b2
    assert y2.shape == (2, B2, D_out2)
    assert jnp.allclose(y2, y2_ref, atol=2e-2, rtol=2e-2)

    # ---- Check 3: force a multi-tile (M, N, K) grid at small shapes via the
    # cap overrides: grid = (3, 2, 4) -> exercises the f32 accumulator across
    # K steps, M padding, and multi-block N. ----
    B3, D_in3, D_out3 = 40, 512, 256
    bound3 = 1.0 / (D_in3 ** 0.5)
    w3 = jax.random.uniform(keys[6], (D_out3, D_in3),
                            minval=-bound3, maxval=bound3, dtype=jnp.float32)
    b3 = jax.random.uniform(keys[7], (D_out3,),
                            minval=-bound3, maxval=bound3, dtype=jnp.float32)
    x3 = jax.random.normal(keys[8], (B3, D_in3), dtype=jnp.float32)

    y3 = dense_forward(x3, w3, b3, tm_cap=16, tn_cap=128, tk_cap=128)
    jax.block_until_ready(y3)
    y3_ref = jnp.dot(x3, w3.T, precision=lax.Precision.HIGHEST) + b3
    assert y3.shape == (B3, D_out3)
    assert jnp.allclose(y3, y3_ref, atol=2e-2, rtol=2e-2)

    print("KERNEL_OK")
</pallas_src>

<mosaic_0001>
module attributes {stable_mosaic.version = 11 : i64} {
  func.func @_dense_kernel(%arg0: i32, %arg1: i32, %arg2: i32, %arg3: memref<8x32xf32, #tpu.memory_space<vmem>>, %arg4: memref<64x32xf32, #tpu.memory_space<vmem>>, %arg5: memref<1x64xf32, #tpu.memory_space<vmem>>, %arg6: memref<8x64xf32, #tpu.memory_space<vmem>>, %arg7: memref<8x64xf32, #tpu.memory_space<vmem>>) attributes {dimension_semantics = [#tpu.dimension_semantics<parallel>, #tpu.dimension_semantics<parallel>, #tpu.dimension_semantics<arbitrary>], iteration_bounds = array<i64: 1, 1, 1>, scalar_prefetch = 0 : i64, scratch_operands = 1 : i64, tpu.core_type = #tpu.core_type<tc>, window_params = [{transform_indices = @transform_0, window_bounds = array<i64: 8, 32>}, {transform_indices = @transform_1, window_bounds = array<i64: 64, 32>}, {transform_indices = @transform_2, window_bounds = array<i64: 1, 64>}, {transform_indices = @transform_3, window_bounds = array<i64: 8, 64>}]} {
    %c0_i32 = arith.constant 0 : i32
    %0 = arith.cmpi eq, %arg2, %c0_i32 : i32
    %1 = arith.extui %0 : i1 to i32
    %c0_i32_0 = arith.constant 0 : i32
    %2 = arith.cmpi ne, %1, %c0_i32_0 : i32
    scf.if %2 {
      %cst_10 = arith.constant 0.000000e+00 : f32
      %12 = vector.broadcast %cst_10 : f32 to vector<8x64xf32>
      %c0_11 = arith.constant 0 : index
      %c0_12 = arith.constant 0 : index
      %13 = vector.load %arg7[%c0_11, %c0_12] : memref<8x64xf32, #tpu.memory_space<vmem>>, vector<8x64xf32>
      tpu.vector_store %arg7[%c0_11, %c0_12], %12 {strides = array<i32>} : memref<8x64xf32, #tpu.memory_space<vmem>>, vector<8x64xf32>,
    } else {
    }
    %c0 = arith.constant 0 : index
    %c0_1 = arith.constant 0 : index
    %3 = vector.load %arg7[%c0, %c0_1] : memref<8x64xf32, #tpu.memory_space<vmem>>, vector<8x64xf32>
    %c0_2 = arith.constant 0 : index
    %c0_3 = arith.constant 0 : index
    %4 = vector.load %arg3[%c0_2, %c0_3] : memref<8x32xf32, #tpu.memory_space<vmem>>, vector<8x32xf32>
    %c0_4 = arith.constant 0 : index
    %c0_5 = arith.constant 0 : index
    %5 = vector.load %arg4[%c0_4, %c0_5] : memref<64x32xf32, #tpu.memory_space<vmem>>, vector<64x32xf32>
    %cst = arith.constant dense<0.000000e+00> : vector<8x64xf32>
    %6 = tpu.matmul %4, %5, %cst {dimension_numbers = #tpu.dot_dimension_numbers<[1], [1], [0], [0], [0, 0, 1, 0], [], []>} : vector<8x32xf32>, vector<64x32xf32>, vector<8x64xf32> -> vector<8x64xf32>
    %7 = arith.addf %3, %6 : vector<8x64xf32>
    %c0_6 = arith.constant 0 : index
    %c0_7 = arith.constant 0 : index
    %8 = vector.load %arg7[%c0_6, %c0_7] : memref<8x64xf32, #tpu.memory_space<vmem>>, vector<8x64xf32>
    tpu.vector_store %arg7[%c0_6, %c0_7], %7 {strides = array<i32>} : memref<8x64xf32, #tpu.memory_space<vmem>>, vector<8x64xf32>,
    %c0_i32_8 = arith.constant 0 : i32
    %9 = arith.cmpi eq, %arg2, %c0_i32_8 : i32
    %10 = arith.extui %9 : i1 to i32
    %c0_i32_9 = arith.constant 0 : i32
    %11 = arith.cmpi ne, %10, %c0_i32_9 : i32
    scf.if %11 {
      %c0_10 = arith.constant 0 : index
      %c0_11 = arith.constant 0 : index
      %12 = vector.load %arg7[%c0_10, %c0_11] : memref<8x64xf32, #tpu.memory_space<vmem>>, vector<8x64xf32>
      %c0_12 = arith.constant 0 : index
      %c0_13 = arith.constant 0 : index
      %13 = vector.load %arg5[%c0_12, %c0_13] : memref<1x64xf32, #tpu.memory_space<vmem>>, vector<1x64xf32>
      %14 = vector.broadcast %13 : vector<1x64xf32> to vector<8x64xf32>
      %15 = arith.addf %12, %14 : vector<8x64xf32>
      %c0_14 = arith.constant 0 : index
      %c0_15 = arith.constant 0 : index
      %16 = vector.load %arg6[%c0_14, %c0_15] : memref<8x64xf32, #tpu.memory_space<vmem>>, vector<8x64xf32>
      tpu.vector_store %arg6[%c0_14, %c0_15], %15 {strides = array<i32>} : memref<8x64xf32, #tpu.memory_space<vmem>>, vector<8x64xf32>,
    } else {
    }
    return
  }
  func.func @transform_0(%arg0: i32, %arg1: i32, %arg2: i32) -> (i32, i32) {
    %c0_i32 = arith.constant 0 : i32
    return %arg0, %arg2 : i32, i32
  }
  func.func @transform_1(%arg0: i32, %arg1: i32, %arg2: i32) -> (i32, i32) {
    %c0_i32 = arith.constant 0 : i32
    return %arg1, %arg2 : i32, i32
  }
  func.func @transform_2(%arg0: i32, %arg1: i32, %arg2: i32) -> (i32, i32) {
    %c0_i32 = arith.constant 0 : i32
    %c0_i32_0 = arith.constant 0 : i32
    return %c0_i32, %arg1 : i32, i32
  }
  func.func @transform_3(%arg0: i32, %arg1: i32, %arg2: i32) -> (i32, i32) {
    %c0_i32 = arith.constant 0 : i32
    return %arg0, %arg1 : i32, i32
  }
}

</mosaic_0001>

<llo_original>
// kernel: tpu_custom_call.1
$region0: #{tpu_custom_call.1}
  #allocation0 [shape = 'u32[]', space=smem, size = 0x4, offset = 0x4, fixed_abs, tag = 'smem constant byte address 0x4 - core index']
  #allocation1 [shape = 'u32[144,128]{1,0:T(1,128)}', space=vmem, size = 0x12000, scoped, tag = 'internal scratch']
  #allocation2 [shape = 'f32[8,64]{1,0:T(8,128)}', space=vmem, size = 0x1000, scoped, tag = 'scratch operand']
  %s0 = inlined_call_operand.vmem [shape: f32[8,32], index: 0, kind: input, shape index: {}]
  %s1 = inlined_call_operand.vmem [shape: f32[64,32], index: 1, kind: input, shape index: {}]
  %s2 = inlined_call_operand.vmem [shape: f32[1,64], index: 2, kind: input, shape index: {}]
  %s3 = inlined_call_operand.hbm [shape: f32[8,64], index: 3, kind: output, shape index: {}]
  %s4 = sld [smem:[#allocation0]]
  $region30: #{tpu_custom_call.1} parent=0
    _
  %s6 = ssub.s32 1, %s4
  %s7 = scalar_select 0, %s6, %s4
  $region1: #{tpu_custom_call.1} parent=0
    #allocation3 [shape = 'u8[4096]{0}', space=vmem, size = 0x1000, scoped, tag = 'output window, operand 0, single buffered']
    #allocation4 [shape = 's32[1]{0}', space=sflag, size = 0x4, scoped, tag = 'scoped memory for tpu_custom_call.1']
    %8 = vsyncpa [#allocation4], 0
    // Predicated region
    $region2: #{tpu_custom_call.1} parent=1 // pred_check
      _
    $region3: #{tpu_custom_call.1} parent=1 // pred_check_branch
      %10 = sbr.rel (0) target = $region5
    $region4: #{tpu_custom_call.1} parent=1 // pred_region
      _
    $region5: #{tpu_custom_call.1} parent=1 // pred_fallthru
      _
    // Predicated region
    $region6: #{tpu_custom_call.1} parent=1 // pred_check
      _
    $region7: #{tpu_custom_call.1} parent=1 // pred_check_branch
      %12 = sbr.rel (0) target = $region9
    $region8: #{tpu_custom_call.1} parent=1 // pred_region
      _
    $region9: #{tpu_custom_call.1} parent=1 // pred_fallthru
      _
    // Predicated region
    $region10: #{tpu_custom_call.1} parent=1 // pred_check
      _
    $region11: #{tpu_custom_call.1} parent=1 // pred_check_branch
      %14 = sbr.rel (0) target = $region13
    $region12: #{tpu_custom_call.1} parent=1 // pred_region
      _
    $region13: #{tpu_custom_call.1} parent=1 // pred_fallthru
      _
    %p15 = scmp.eq.s32.totalorder 0, 0
    // Predicated region
    $region14: #{tpu_custom_call.1} parent=1 // pred_check
      %p16 = pneg %p15
    $region15: #{tpu_custom_call.1} parent=1 // pred_check_branch
      %18 = sbr.rel (%p16) target = $region17
    $region16: #{tpu_custom_call.1} parent=1 // pred_region
      %vm19 = vcmask 523264
      %20 = vst.msk [vmem:[#allocation2] sm:$0xff] %vm19, 0.0
    $region17: #{tpu_custom_call.1} parent=1 // pred_fallthru
      _
    %v21 = vld [vmem:[#allocation2] sm:$0xff]
    %v22 = vld [vmem:[%s0] sm:$0xff]
    %v23 = vld [vmem:[%s1] sm:$0xff]
    %v24 = vld [vmem:[%s1 + $0x8] sm:$0xff]
    %v25 = vld [vmem:[%s1 + $0x10] sm:$0xff]
    %v26 = vld [vmem:[%s1 + $0x18] sm:$0xff]
    %v27 = vld [vmem:[%s1 + $0x20] sm:$0xff]
    %v28 = vld [vmem:[%s1 + $0x28] sm:$0xff]
    %v29 = vld [vmem:[%s1 + $0x30] sm:$0xff]
    %v30 = vld [vmem:[%s1 + $0x38] sm:$0xff]
    %vm31 = vcmask 261120
    %v33 = vsel %vm31, %v22, 0
    %v36 = vsel %vm31, %v23, 0
    %v39 = vsel %vm31, %v24, 0
    %v42 = vsel %vm31, %v25, 0
    %v45 = vsel %vm31, %v26, 0
    %v48 = vsel %vm31, %v27, 0
    %v51 = vsel %vm31, %v28, 0
    %v54 = vsel %vm31, %v29, 0
    %v57 = vsel %vm31, %v30, 0
    %59 = vmatprep.subr.mxu0 0.0
    %60 = vmatpush1.xpose.msra.mxu0 0.0
    %61 = vmatprep.subr.mxu0 0.0
    %62 = vmatpush1.xpose.msra.mxu0 0.0
    %63 = vmatprep.subr.mxu0 0.0
    %64 = vmatpush1.xpose.msra.mxu0 0.0
    %65 = vmatprep.subr.mxu0 0.0
    %66 = vmatpush1.xpose.msra.mxu0 0.0
    %67 = vmatprep.subr.mxu0 0.0
    %68 = vmatpush1.xpose.msra.mxu0 0.0
    %69 = vmatprep.subr.mxu0 0.0
    %70 = vmatpush1.xpose.msra.mxu0 0.0
    %71 = vmatprep.subr.mxu0 0.0
    %72 = vmatpush1.xpose.msra.mxu0 0.0
    %73 = vmatprep.subr.mxu0 0.0
    %74 = vmatpush1.xpose.msra.mxu0 0.0
    %75 = vmatprep.subr.mxu0 0.0
    %76 = vmatpush1.xpose.msra.mxu0 %v57
    %77 = vmatprep.subr.mxu0 0.0
    %78 = vmatpush1.xpose.msra.mxu0 %v54
    %79 = vmatprep.subr.mxu0 0.0
    %80 = vmatpush1.xpose.msra.mxu0 %v51
    %81 = vmatprep.subr.mxu0 0.0
    %82 = vmatpush1.xpose.msra.mxu0 %v48
    %83 = vmatprep.subr.mxu0 0.0
    %84 = vmatpush1.xpose.msra.mxu0 %v45
    %85 = vmatprep.subr.mxu0 0.0
    %86 = vmatpush1.xpose.msra.mxu0 %v42
    %87 = vmatprep.subr.mxu0 0.0
    %88 = vmatpush1.xpose.msra.mxu0 %v39
    %89 = vmatprep.subr.mxu0 0.0
    %90 = vmatpush1.xpose.msra.mxu0 %v36
    %91 = vmatprep.subr.mxu0 0.0
    %92 = vmatpush2.xpose.msra.mxu0 0.0
    %93 = vmatprep.subr.mxu0 0.0
    %94 = vmatpush2.xpose.msra.mxu0 0.0
    %95 = vmatprep.subr.mxu0 0.0
    %96 = vmatpush2.xpose.msra.mxu0 0.0
    %97 = vmatprep.subr.mxu0 0.0
    %98 = vmatpush2.xpose.msra.mxu0 0.0
    %99 = vmatprep.subr.mxu0 0.0
    %100 = vmatpush2.xpose.msra.mxu0 0.0
    %101 = vmatprep.subr.mxu0 0.0
    %102 = vmatpush2.xpose.msra.mxu0 0.0
    %103 = vmatprep.subr.mxu0 0.0
    %104 = vmatpush2.xpose.msra.mxu0 0.0
    %105 = vmatprep.subr.mxu0 0.0
    %106 = vmatpush2.xpose.msra.mxu0 0.0
    %107 = vmatprep.subr.mxu0 0.0
    %108 = vmatpush2.xpose.msra.mxu0 0.0
    %109 = vmatprep.subr.mxu0 0.0
    %110 = vmatpush2.xpose.msra.mxu0 0.0
    %111 = vmatprep.subr.mxu0 0.0
    %112 = vmatpush2.xpose.msra.mxu0 0.0
    %113 = vmatprep.subr.mxu0 0.0
    %114 = vmatpush2.xpose.msra.mxu0 0.0
    %115 = vmatprep.subr.mxu0 0.0
    %116 = vmatpush2.xpose.msra.mxu0 0.0
    %117 = vmatprep.subr.mxu0 0.0
    %118 = vmatpush2.xpose.msra.mxu0 0.0
    %119 = vmatprep.subr.mxu0 0.0
    %120 = vmatpush2.xpose.msra.mxu0 0.0
    %121 = vmatprep.subr.mxu0 0.0
    %122 = vmatpush2.xpose.msra.mxu0 0.0
    %123 = vmatprep.mubr.f32.mxu0 0.0
    %124 = vmatmul.mubr.f32.gmra.mxu0 %v33
    %v125 = vpop.f32.mrf.mxu0
    %v126 = vadd.f32 0.0, %v125
    %v127 = vpop.f32.mrf.mxu0
    %128 = vdwg.mxu0
    %v129 = vadd.f32 %v21, %v126
    %vm130 = vcmask 523264
    %131 = vst.msk [vmem:[#allocation2] sm:$0xff] %vm130, %v129
    // Predicated region
    $region18: #{tpu_custom_call.1} parent=1 // pred_check
      %p132 = pneg %p15
    $region19: #{tpu_custom_call.1} parent=1 // pred_check_branch
      %134 = sbr.rel (%p132) target = $region21
    $region20: #{tpu_custom_call.1} parent=1 // pred_region
      %v135 = vld [vmem:[#allocation2] sm:$0xff]
      %v136 = vld [vmem:[%s2] sm:$0x1]
      %v138 = vlaneseq
      %v139 = vshrl.u32 %v138, 7
      %v140 = vsub.s32 0, %v139
      %v141 = vrot.slane %v136, %v140
      %v143 = vadd.f32 %v135, %v141
      %144 = vst.msk [vmem:[#allocation3] sm:$0xff] %vm130, %v143
    $region21: #{tpu_custom_call.1} parent=1 // pred_fallthru
      _
    // Predicated region
    $region22: #{tpu_custom_call.1} parent=1 // pred_check
      _
    $region23: #{tpu_custom_call.1} parent=1 // pred_check_branch
      %146 = sbr.rel (0) target = $region25
    $region24: #{tpu_custom_call.1} parent=1 // pred_region
      %s148 = ssub.s32 128, 128
      %149 = vsyncadd [#allocation4], %s148
      %s151 = sshll.u32 [#allocation3], 4
      %s152 = int_to_ptr.vmem [resolvable:$true] %s151
      %154 = dma.vmem_to_hbm [thread:$0]  %s152, 128, %s3, [#allocation4]
    $region25: #{tpu_custom_call.1} parent=1 // pred_fallthru
      _
    // Predicated region
    $region26: #{tpu_custom_call.1} parent=1 // pred_check
      _
    $region27: #{tpu_custom_call.1} parent=1 // pred_check_branch
      %156 = sbr.rel (0) target = $region29
    $region28: #{tpu_custom_call.1} parent=1 // pred_region
      %157 = dma.done [#allocation4], 128
    $region29: #{tpu_custom_call.1} parent=1 // pred_fallthru
      _
    %158 = vsyncpa [#allocation4], 1

</llo_original>
